<compile_context>
chip_gen: v7x
topology: tpu7x:2x2x1
jax: 0.10.0
libtpu: 0.0.40
codegen_flags: <defaults>
</compile_context>

<pallas_src>
import math

import jax
import jax.numpy as jnp
from jax.experimental import pallas as pl
from jax.experimental.pallas import tpu as pltpu


def _round_up(x, m):
    return ((x + m - 1) // m) * m


# ----------------------------------------------------------------------------
# Kernels
# ----------------------------------------------------------------------------
def _sg_eval_kernel(h_ref, u_ref, w_ref, b_ref, hout_ref, f_ref):
    """Eval mode: gate + hidden update only (no norms)."""
    h = h_ref[...].astype(jnp.float32)     # (bn, H)
    u = u_ref[...].astype(jnp.float32)     # (bn, H)
    wh = w_ref[0:1, :]                     # (1, H)  weight of wh(hidden)
    uh = w_ref[1:2, :]                     # (1, H)  weight of uh(update)

    # Fused "wh(hidden) + uh(update) + b": one VPU pass + one cross-lane reduce.
    z = jnp.sum(h * wh + u * uh, axis=-1, keepdims=True) + b_ref[0]   # (bn, 1)
    f = 1.0 / (1.0 + jnp.exp(-z))          # exact sigmoid (exp on EUP)

    hout_ref[...] = (h + f * u).astype(hout_ref.dtype)
    f_ref[...] = f


def _sg_train_kernel(h_ref, u_ref, w_ref, b_ref, hout_ref, aux_ref):
    """Training mode: gate + hidden update + merged [f, ||h_out||^2, ||u||^2]."""
    h = h_ref[...].astype(jnp.float32)
    u = u_ref[...].astype(jnp.float32)
    wh = w_ref[0:1, :]
    uh = w_ref[1:2, :]

    z = jnp.sum(h * wh + u * uh, axis=-1, keepdims=True) + b_ref[0]
    f = 1.0 / (1.0 + jnp.exp(-z))
    h_new = h + f * u
    hout_ref[...] = h_new.astype(hout_ref.dtype)

    # Single merged narrow output (one DMA stream); sqrt is done in the wrapper.
    aux_ref[:, 0:1] = f
    aux_ref[:, 1:2] = jnp.sum(h_new * h_new, axis=-1, keepdims=True)
    aux_ref[:, 2:3] = jnp.sum(u * u, axis=-1, keepdims=True)


# ----------------------------------------------------------------------------
# Wrapper
# ----------------------------------------------------------------------------
def _vmem_sizing():
    """Returns (block_budget_bytes, vmem_limit_bytes) per TPU generation."""
    cap = 0
    try:
        cap = int(pltpu.get_tpu_info().vmem_capacity_bytes)
    except Exception:
        cap = 0
    if cap >= 128 * 1024 * 1024:          # v5e / v6e: 128 MiB physical VMEM
        return 64 * 1024 * 1024, 96 * 1024 * 1024
    # v7x (64 MiB per TensorCore) or unknown generation: stay conservative.
    return 32 * 1024 * 1024, 48 * 1024 * 1024


def scala_gating(update, hidden, params, *, training=False, block_rows=None,
                 eps=1e-6):
    """Forward pass of ScalaGating.

    update, hidden: (..., H) arrays of identical shape/dtype.
    params: {"wh_w": (1, H), "uh_w": (1, H), "uh_b": (1,)}
    Returns (hidden_out, (reg_1, reg_2) or (None, None), f) like the torch module.
    """
    orig_shape = hidden.shape
    H = orig_shape[-1]
    leading = orig_shape[:-1]
    N = int(math.prod(leading)) if leading else 1
    dtype = hidden.dtype

    h2 = hidden.reshape(N, H)
    u2 = update.reshape(N, H).astype(dtype)

    w_cat = jnp.concatenate(
        [params["wh_w"].reshape(1, H), params["uh_w"].reshape(1, H)],
        axis=0).astype(jnp.float32)                       # (2, H)
    bias = params["uh_b"].reshape(1).astype(jnp.float32)  # (1,) -> SMEM scalar

    # --- Block sizing from the physically padded VMEM footprint -------------
    Hp = _round_up(H, 128)                                # lane-padded row width
    itemsize = dtype.itemsize
    block_budget, vmem_limit = _vmem_sizing()
    # 3 big streams (hidden, update, hidden_out), each double-buffered, plus
    # one narrow f32 output padded to 128 lanes (x2 buffers).
    per_row_bytes = 3 * 2 * Hp * itemsize + 2 * 128 * 4
    const_bytes = 2 * 8 * Hp * 4                           # (2,H) weight block
    if block_rows is None:
        bn_max = max((block_budget - const_bytes) // per_row_bytes, 8)
        bn_max = (bn_max // 8) * 8
    else:
        bn_max = _round_up(block_rows, 8)
    # Keep >= ~4 grid steps so both v7x TensorCores get work ("parallel" axis).
    bn = max(8, min(bn_max, _round_up(pl.cdiv(N, 4), 8)))
    grid = pl.cdiv(N, bn)

    narrow_w = 3 if training else 1
    kernel = _sg_train_kernel if training else _sg_eval_kernel

    hout, aux = pl.pallas_call(
        kernel,
        out_shape=(
            jax.ShapeDtypeStruct((N, H), dtype),            # hidden_out
            jax.ShapeDtypeStruct((N, narrow_w), jnp.float32),  # f (+ sq norms)
        ),
        grid_spec=pltpu.PrefetchScalarGridSpec(
            num_scalar_prefetch=0,
            grid=(grid,),
            in_specs=[
                pl.BlockSpec((bn, H), lambda i: (i, 0)),              # hidden
                pl.BlockSpec((bn, H), lambda i: (i, 0)),              # update
                pl.BlockSpec((2, H), lambda i: (0, 0)),               # [wh; uh]
                pl.BlockSpec(memory_space=pltpu.MemorySpace.SMEM),    # uh bias
            ],
            out_specs=[
                pl.BlockSpec((bn, H), lambda i: (i, 0)),
                pl.BlockSpec((bn, narrow_w), lambda i: (i, 0)),
            ],
        ),
        input_output_aliases={0: 0},   # donate hidden -> hidden_out
        compiler_params=pltpu.CompilerParams(
            dimension_semantics=("parallel",),
            vmem_limit_bytes=vmem_limit),
    )(h2, u2, w_cat, bias)

    hidden_out = hout.reshape(orig_shape)
    f = aux[:, 0:1].reshape(leading + (1,))

    reg = (None, None)
    if training:
        # Finish the regulariser from the in-kernel squared norms (tiny).
        h_norm = jnp.sqrt(aux[:, 1]).reshape(leading)
        u_norm = jnp.sqrt(aux[:, 2]).reshape(leading)
        wh_norm = jnp.sqrt(jnp.sum(params["wh_w"].astype(jnp.float32) ** 2))
        uh_norm = jnp.sqrt(jnp.sum(params["uh_w"].astype(jnp.float32) ** 2))
        b = params["uh_b"].astype(jnp.float32)
        reg_1 = wh_norm * h_norm + uh_norm * u_norm + jnp.abs(b)
        reg_2 = (h_norm - u_norm) / (jnp.abs(h_norm + u_norm) + eps)
        reg = (reg_1, reg_2)

    return hidden_out, reg, f


# ----------------------------------------------------------------------------
# Pure-JAX reference (matches the PyTorch forward)
# ----------------------------------------------------------------------------
def reference(update, hidden, params, *, training=False, eps=1e-6):
    wh_w = params["wh_w"]
    uh_w = params["uh_w"]
    uh_b = params["uh_b"]
    z = hidden @ wh_w.T + update @ uh_w.T + uh_b
    f = jax.nn.sigmoid(z)
    hidden_out = hidden + f * update
    reg = (None, None)
    if training:
        h = jnp.linalg.norm(hidden_out, axis=-1)
        u = jnp.linalg.norm(update, axis=-1)
        whn = jnp.linalg.norm(wh_w)
        uhn = jnp.linalg.norm(uh_w)
        reg_1 = whn * h + uhn * u + jnp.abs(uh_b)
        reg_2 = (h - u) / (jnp.abs(h + u) + eps)
        reg = (reg_1, reg_2)
    return hidden_out, reg, f


if __name__ == "__main__":
    B, T, H = 2, 8, 32

    key = jax.random.PRNGKey(0)
    k1, k2, k3, k4, k5 = jax.random.split(key, 5)
    hidden = jax.random.normal(k1, (B, T, H), jnp.float32)
    update = jax.random.normal(k2, (B, T, H), jnp.float32)
    params = dict(
        wh_w=jax.random.normal(k3, (1, H), jnp.float32) * 0.1,
        uh_w=jax.random.normal(k4, (1, H), jnp.float32) * 0.1,
        uh_b=jax.random.normal(k5, (1,), jnp.float32) * 0.1,
    )

    # Reference first (kernel marks `hidden` as donatable via aliasing).
    ref_h, ref_reg, ref_f = reference(update, hidden, params, training=True)
    ref_h = jax.block_until_ready(ref_h)

    # Eval-mode forward (reg = (None, None)).
    h_eval, reg_eval, f_eval = scala_gating(update, hidden, params, training=False)
    h_eval = jax.block_until_ready(h_eval)
    f_eval = jax.block_until_ready(f_eval)
    assert reg_eval == (None, None)

    # Training-mode forward (also checks the fused squared-norm outputs).
    h_out, reg, f = scala_gating(update, hidden, params, training=True)
    h_out = jax.block_until_ready(h_out)
    f = jax.block_until_ready(f)

    assert h_out.shape == (B, T, H) and f.shape == (B, T, 1)
    assert jnp.allclose(h_out, ref_h, rtol=1e-5, atol=1e-5)
    assert jnp.allclose(f, ref_f, rtol=1e-5, atol=1e-5)
    assert jnp.allclose(reg[0], ref_reg[0], rtol=1e-5, atol=1e-5)
    assert jnp.allclose(reg[1], ref_reg[1], rtol=1e-5, atol=1e-5)
    assert jnp.allclose(h_eval, ref_h, rtol=1e-5, atol=1e-5)
    assert jnp.allclose(f_eval, ref_f, rtol=1e-5, atol=1e-5)

    # Exercise a shape where N % block_rows != 0 (partial boundary block path).
    hidden2 = jax.random.normal(k1, (3, 5, H), jnp.float32)
    update2 = jax.random.normal(k2, (3, 5, H), jnp.float32)
    ref_h2, _, ref_f2 = reference(update2, hidden2, params, training=False)
    h2_out, _, f2 = scala_gating(update2, hidden2, params, training=False,
                                 block_rows=8)
    h2_out = jax.block_until_ready(h2_out)
    assert jnp.allclose(h2_out, ref_h2, rtol=1e-5, atol=1e-5)
    assert jnp.allclose(f2, ref_f2, rtol=1e-5, atol=1e-5)

    print("KERNEL_OK")
</pallas_src>

<mosaic_0001>
module attributes {stable_mosaic.version = 11 : i64} {
  func.func @_sg_eval_kernel(%arg0: i32, %arg1: memref<8x32xf32, #tpu.memory_space<vmem>>, %arg2: memref<8x32xf32, #tpu.memory_space<vmem>>, %arg3: memref<2x32xf32, #tpu.memory_space<vmem>>, %arg4: memref<1xf32, #tpu.memory_space<smem>>, %arg5: memref<8x32xf32, #tpu.memory_space<vmem>>, %arg6: memref<8x1xf32, #tpu.memory_space<vmem>>) attributes {dimension_semantics = [#tpu.dimension_semantics<parallel>], iteration_bounds = array<i64: 2>, scalar_prefetch = 0 : i64, scratch_operands = 0 : i64, tpu.core_type = #tpu.core_type<tc>, window_params = [{transform_indices = @transform_0, window_bounds = array<i64: 8, 32>}, {transform_indices = @transform_1, window_bounds = array<i64: 8, 32>}, {pipeline_mode = #tpu.pipeline_mode<synchronous>, transform_indices = @transform_2, window_bounds = array<i64: 2, 32>}, {transform_indices = @transform_3, window_bounds = array<i64: 1>}, {transform_indices = @transform_4, window_bounds = array<i64: 8, 32>}, {transform_indices = @transform_5, window_bounds = array<i64: 8, 1>}]} {
    %c0 = arith.constant 0 : index
    %c0_0 = arith.constant 0 : index
    %0 = vector.load %arg1[%c0, %c0_0] : memref<8x32xf32, #tpu.memory_space<vmem>>, vector<8x32xf32>
    %c0_1 = arith.constant 0 : index
    %c0_2 = arith.constant 0 : index
    %1 = vector.load %arg2[%c0_1, %c0_2] : memref<8x32xf32, #tpu.memory_space<vmem>>, vector<8x32xf32>
    %c0_3 = arith.constant 0 : index
    %c0_4 = arith.constant 0 : index
    %2 = vector.load %arg3[%c0_3, %c0_4] : memref<2x32xf32, #tpu.memory_space<vmem>>, vector<1x32xf32>
    %c1 = arith.constant 1 : index
    %c0_5 = arith.constant 0 : index
    %3 = vector.load %arg3[%c1, %c0_5] : memref<2x32xf32, #tpu.memory_space<vmem>>, vector<1x32xf32>
    %4 = vector.broadcast %2 : vector<1x32xf32> to vector<8x32xf32>
    %5 = arith.mulf %0, %4 : vector<8x32xf32>
    %6 = vector.broadcast %3 : vector<1x32xf32> to vector<8x32xf32>
    %7 = arith.mulf %1, %6 : vector<8x32xf32>
    %8 = arith.addf %5, %7 : vector<8x32xf32>
    %cst = arith.constant dense<0.000000e+00> : vector<8xf32>
    %9 = vector.multi_reduction <add>, %8, %cst [1] : vector<8x32xf32> to vector<8xf32>
    %10 = vector.shape_cast %9 : vector<8xf32> to vector<8x1xf32>
    %c0_6 = arith.constant 0 : index
    %11 = memref.load %arg4[%c0_6] : memref<1xf32, #tpu.memory_space<smem>>
    %12 = vector.broadcast %11 : f32 to vector<8x1xf32>
    %13 = arith.addf %10, %12 : vector<8x1xf32>
    %cst_7 = arith.constant 0.000000e+00 : f32
    %14 = vector.broadcast %cst_7 : f32 to vector<8x1xf32>
    %15 = arith.subf %14, %13 : vector<8x1xf32>
    %16 = math.exp %15 : vector<8x1xf32>
    %cst_8 = arith.constant 1.000000e+00 : f32
    %17 = vector.broadcast %cst_8 : f32 to vector<8x1xf32>
    %18 = arith.addf %17, %16 : vector<8x1xf32>
    %cst_9 = arith.constant 1.000000e+00 : f32
    %19 = vector.broadcast %cst_9 : f32 to vector<8x1xf32>
    %20 = arith.divf %19, %18 : vector<8x1xf32>
    %21 = vector.broadcast %20 : vector<8x1xf32> to vector<8x32xf32>
    %22 = arith.mulf %21, %1 : vector<8x32xf32>
    %23 = arith.addf %0, %22 : vector<8x32xf32>
    %c0_10 = arith.constant 0 : index
    %c0_11 = arith.constant 0 : index
    %24 = vector.load %arg5[%c0_10, %c0_11] : memref<8x32xf32, #tpu.memory_space<vmem>>, vector<8x32xf32>
    tpu.vector_store %arg5[%c0_10, %c0_11], %23 {strides = array<i32>} : memref<8x32xf32, #tpu.memory_space<vmem>>, vector<8x32xf32>,
    %c0_12 = arith.constant 0 : index
    %c0_13 = arith.constant 0 : index
    %25 = vector.load %arg6[%c0_12, %c0_13] : memref<8x1xf32, #tpu.memory_space<vmem>>, vector<8x1xf32>
    tpu.vector_store %arg6[%c0_12, %c0_13], %20 {strides = array<i32>} : memref<8x1xf32, #tpu.memory_space<vmem>>, vector<8x1xf32>,
    return
  }
  func.func @transform_0(%arg0: i32) -> (i32, i32) {
    %c0_i32 = arith.constant 0 : i32
    %c0_i32_0 = arith.constant 0 : i32
    return %arg0, %c0_i32 : i32, i32
  }
  func.func @transform_1(%arg0: i32) -> (i32, i32) {
    %c0_i32 = arith.constant 0 : i32
    %c0_i32_0 = arith.constant 0 : i32
    return %arg0, %c0_i32 : i32, i32
  }
  func.func @transform_2(%arg0: i32) -> (i32, i32) {
    %c0_i32 = arith.constant 0 : i32
    %c0_i32_0 = arith.constant 0 : i32
    %c0_i32_1 = arith.constant 0 : i32
    return %c0_i32, %c0_i32_0 : i32, i32
  }
  func.func @transform_3(%arg0: i32) -> i32 {
    %c0_i32 = arith.constant 0 : i32
    %c0_i32_0 = arith.constant 0 : i32
    return %c0_i32 : i32
  }
  func.func @transform_4(%arg0: i32) -> (i32, i32) {
    %c0_i32 = arith.constant 0 : i32
    %c0_i32_0 = arith.constant 0 : i32
    return %arg0, %c0_i32 : i32, i32
  }
  func.func @transform_5(%arg0: i32) -> (i32, i32) {
    %c0_i32 = arith.constant 0 : i32
    %c0_i32_0 = arith.constant 0 : i32
    return %arg0, %c0_i32 : i32, i32
  }
}

</mosaic_0001>

<llo_original>
// kernel: tpu_custom_call.1
$region0: #{tpu_custom_call.1}
  #allocation0 [shape = 'u32[]', space=smem, size = 0x4, offset = 0x4, fixed_abs, tag = 'smem constant byte address 0x4 - core index']
  #allocation1 [shape = 'u32[144,128]{1,0:T(1,128)}', space=vmem, size = 0x12000, scoped, tag = 'internal scratch']
  #allocation2 [shape = 'f32[1]{0:T(128)S(6)}', space=smem, size = 0x200, scoped, tag = 'scoped memory for tpu_custom_call.1']
  %s0 = inlined_call_operand.vmem [shape: f32[16,32], index: 0, kind: input, shape index: {}, may-alias: {0,4}]
  %s1 = inlined_call_operand.vmem [shape: f32[16,32], index: 1, kind: input, shape index: {}]
  %s2 = inlined_call_operand.vmem [shape: f32[2,32], index: 2, kind: input, shape index: {}]
  %s3 = inlined_call_operand.<no memory space> [shape: f32[1], index: 3, kind: input, shape index: {}]
  %s4 = inlined_call_operand.vmem [shape: f32[16,32], index: 4, kind: output, shape index: {0}, may-alias: {0,4}]
  %s5 = inlined_call_operand.vmem [shape: f32[16,1], index: 5, kind: output, shape index: {1}]
  %6 = xla_tuple %s4, %s5
  %s7 = sld [smem:[#allocation0]]
  $region57: #{tpu_custom_call.1} parent=0
    _
  %s9 = ssub.s32 1, %s7
  %s10 = scalar_select 0, %s9, %s7
  %11 = sst [smem:[#allocation2]] %s3
  loop: start=0, step=1, limit=4
  $region2: #{tpu_custom_call.1} parent=0 // loop_pre_header
    _
  $region3: #{tpu_custom_call.1} parent=0 // loop_header
    %s13 = sphi 0, %s17
    %p14 = scmp.ge.s32.totalorder %s13, 4
    %s23 = sphi 0, %s25
    %s26 = sphi 0, %s23
    %s27 = sphi 0, %s26
    %s43 = sphi 0, %s27
    %s49 = sphi 0, %s51
    %s52 = sphi 0, %s49
    %s53 = sphi 0, %s52
    %s69 = sphi 0, %s53
    %s73 = sphi 0, %s73
    %s75 = sphi 0, %s73
    %s76 = sphi 0, %s75
    %s90 = sphi 0, %s76
    %s94 = sphi 0, %s94
    %s96 = sphi 0, %s94
    %s97 = sphi 0, %s96
    %s111 = sphi 0, %s97
    %s117 = sphi 0, %s119
    %s120 = sphi 0, %s117
    %s121 = sphi 0, %s120
    %s137 = sphi 0, %s121
    %s143 = sphi 0, %s145
    %s146 = sphi 0, %s143
    %s147 = sphi 0, %s146
    %s163 = sphi 0, %s147
  $region4: #{tpu_custom_call.1} parent=0 // loop_header_branch
    %16 = sbr.rel (%p14) target = $region8
  $region5: #{tpu_custom_call.1} parent=0 // loop_body
    %s18 = ssub.s32 %s13, 1
    %s19 = ssub.s32 %s13, 2
    %s20 = sadd.s32 %s13, 1
    %s21 = ssub.s32 %s13, %s20
    %p22 = scmp.eq.s32.totalorder %s21, 0
    %s24 = sadd.s32 %s23, 1
    %s25 = scalar_select %p22, %s23, %s24
    %p28 = pneg %p22
    %p29 = scmp.eq.s32.totalorder %s13, 1
    %p30 = por %p28, %p29
    %p31 = scmp.ne.s32.totalorder %s23, %s26
    %p32 = scmp.eq.s32.totalorder %s13, 0
    %p33 = por %p31, %p32
    %p34 = scmp.ne.s32.totalorder %s23, %s26
    %p35 = scmp.eq.s32.totalorder %s18, 1
    %p36 = por %p34, %p35
    %p37 = scmp.ne.s32.totalorder %s26, %s27
    %p38 = scmp.eq.s32.totalorder %s18, 0
    %p39 = por %p37, %p38
    %p40 = scmp.ne.s32.totalorder %s26, %s27
    %p41 = scmp.eq.s32.totalorder %s19, 1
    %p42 = por %p40, %p41
    %p44 = scmp.ne.s32.totalorder %s27, %s43
    %p45 = scmp.eq.s32.totalorder %s19, 0
    %p46 = por %p44, %p45
    %s47 = ssub.s32 %s13, %s20
    %p48 = scmp.eq.s32.totalorder %s47, 0
    %s50 = sadd.s32 %s49, 1
    %s51 = scalar_select %p48, %s49, %s50
    %p54 = pneg %p48
    %p55 = scmp.eq.s32.totalorder %s13, 1
    %p56 = por %p54, %p55
    %p57 = scmp.ne.s32.totalorder %s49, %s52
    %p58 = scmp.eq.s32.totalorder %s13, 0
    %p59 = por %p57, %p58
    %p60 = scmp.ne.s32.totalorder %s49, %s52
    %p61 = scmp.eq.s32.totalorder %s18, 1
    %p62 = por %p60, %p61
    %p63 = scmp.ne.s32.totalorder %s52, %s53
    %p64 = scmp.eq.s32.totalorder %s18, 0
    %p65 = por %p63, %p64
    %p66 = scmp.ne.s32.totalorder %s52, %s53
    %p67 = scmp.eq.s32.totalorder %s19, 1
    %p68 = por %p66, %p67
    %p70 = scmp.ne.s32.totalorder %s53, %s69
    %p71 = scmp.eq.s32.totalorder %s19, 0
    %p72 = por %p70, %p71
    %s74 = sadd.s32 %s73, 1
    %p77 = scmp.eq.s32.totalorder %s13, 1
    %p78 = scmp.ne.s32.totalorder %s73, %s75
    %p79 = scmp.eq.s32.totalorder %s13, 0
    %p80 = por %p78, %p79
    %p81 = scmp.ne.s32.totalorder %s73, %s75
    %p82 = scmp.eq.s32.totalorder %s18, 1
    %p83 = por %p81, %p82
    %p84 = scmp.ne.s32.totalorder %s75, %s76
    %p85 = scmp.eq.s32.totalorder %s18, 0
    %p86 = por %p84, %p85
    %p87 = scmp.ne.s32.totalorder %s75, %s76
    %p88 = scmp.eq.s32.totalorder %s19, 1
    %p89 = por %p87, %p88
    %p91 = scmp.ne.s32.totalorder %s76, %s90
    %p92 = scmp.eq.s32.totalorder %s19, 0
    %p93 = por %p91, %p92
    %s95 = sadd.s32 %s94, 1
    %p98 = scmp.eq.s32.totalorder %s13, 1
    %p99 = scmp.ne.s32.totalorder %s94, %s96
    %p100 = scmp.eq.s32.totalorder %s13, 0
    %p101 = por %p99, %p100
    %p102 = scmp.ne.s32.totalorder %s94, %s96
    %p103 = scmp.eq.s32.totalorder %s18, 1
    %p104 = por %p102, %p103
    %p105 = scmp.ne.s32.totalorder %s96, %s97
    %p106 = scmp.eq.s32.totalorder %s18, 0
    %p107 = por %p105, %p106
    %p108 = scmp.ne.s32.totalorder %s96, %s97
    %p109 = scmp.eq.s32.totalorder %s19, 1
    %p110 = por %p108, %p109
    %p112 = scmp.ne.s32.totalorder %s97, %s111
    %p113 = scmp.eq.s32.totalorder %s19, 0
    %p114 = por %p112, %p113
    %s115 = ssub.s32 %s13, %s20
    %p116 = scmp.eq.s32.totalorder %s115, 0
    %s118 = sadd.s32 %s117, 1
    %s119 = scalar_select %p116, %s117, %s118
    %p122 = pneg %p116
    %p123 = scmp.eq.s32.totalorder %s13, 1
    %p124 = por %p122, %p123
    %p125 = scmp.ne.s32.totalorder %s117, %s120
    %p126 = scmp.eq.s32.totalorder %s13, 0
    %p127 = por %p125, %p126
    %p128 = scmp.ne.s32.totalorder %s117, %s120
    %p129 = scmp.eq.s32.totalorder %s18, 1
    %p130 = por %p128, %p129
    %p131 = scmp.ne.s32.totalorder %s120, %s121
    %p132 = scmp.eq.s32.totalorder %s18, 0
    %p133 = por %p131, %p132
    %p134 = scmp.ne.s32.totalorder %s120, %s121
    %p135 = scmp.eq.s32.totalorder %s19, 1
    %p136 = por %p134, %p135
    %p138 = scmp.ne.s32.totalorder %s121, %s137
    %p139 = scmp.eq.s32.totalorder %s19, 0
    %p140 = por %p138, %p139
    %s141 = ssub.s32 %s13, %s20
    %p142 = scmp.eq.s32.totalorder %s141, 0
    %s144 = sadd.s32 %s143, 1
    %s145 = scalar_select %p142, %s143, %s144
    %p148 = pneg %p142
    %p149 = scmp.eq.s32.totalorder %s13, 1
    %p150 = por %p148, %p149
    %p151 = scmp.ne.s32.totalorder %s143, %s146
    %p152 = scmp.eq.s32.totalorder %s13, 0
    %p153 = por %p151, %p152
    %p154 = scmp.ne.s32.totalorder %s143, %s146
    %p155 = scmp.eq.s32.totalorder %s18, 1
    %p156 = por %p154, %p155
    %p157 = scmp.ne.s32.totalorder %s146, %s147
    %p158 = scmp.eq.s32.totalorder %s18, 0
    %p159 = por %p157, %p158
    %p160 = scmp.ne.s32.totalorder %s146, %s147
    %p161 = scmp.eq.s32.totalorder %s19, 1
    %p162 = por %p160, %p161
    %p164 = scmp.ne.s32.totalorder %s147, %s163
    %p165 = scmp.eq.s32.totalorder %s19, 0
    %p166 = por %p164, %p165
    %p167 = scmp.le.s32.totalorder 1, %s13
    %p168 = scmp.lt.s32.totalorder %s13, 3
    %p169 = pnand %p167, %p168
    %p170 = pneg %p169
    // Predicated region
    $region9: #{tpu_custom_call.1} parent=5 // pred_check
      _
    $region10: #{tpu_custom_call.1} parent=5 // pred_check_branch
      %172 = sbr.rel (%p169) target = $region12
    $region11: #{tpu_custom_call.1} parent=5 // pred_region
      %s173 = ssub.s32 %s13, 1
      // Predicated region
      $region13: #{tpu_custom_call.1} parent=11 // pred_check
        %p174 = pneg %p86
      $region14: #{tpu_custom_call.1} parent=11 // pred_check_branch
        %176 = sbr.rel (%p174) target = $region16
      $region15: #{tpu_custom_call.1} parent=11 // pred_region
        _
      $region16: #{tpu_custom_call.1} parent=11 // pred_fallthru
        _
      // Predicated region
      $region17: #{tpu_custom_call.1} parent=11 // pred_check
        %p177 = pneg %p107
      $region18: #{tpu_custom_call.1} parent=11 // pred_check_branch
        %179 = sbr.rel (%p177) target = $region20
      $region19: #{tpu_custom_call.1} parent=11 // pred_region
        _
      $region20: #{tpu_custom_call.1} parent=11 // pred_fallthru
        _
    $region12: #{tpu_custom_call.1} parent=5 // pred_fallthru
      _
    %p180 = scmp.lt.s32.totalorder %s13, 2
    // Predicated region
    $region21: #{tpu_custom_call.1} parent=5 // pred_check
      %p181 = pneg %p180
    $region22: #{tpu_custom_call.1} parent=5 // pred_check_branch
      %183 = sbr.rel (%p181) target = $region24
    $region23: #{tpu_custom_call.1} parent=5 // pred_region
      // Predicated region
      $region25: #{tpu_custom_call.1} parent=23 // pred_check
        %p184 = pneg %p33
      $region26: #{tpu_custom_call.1} parent=23 // pred_check_branch
        %186 = sbr.rel (%p184) target = $region28
      $region27: #{tpu_custom_call.1} parent=23 // pred_region
        %p187 = scmp.lt.s32.totalorder %s13, 1
        %s188 = scalar_select %p187, %s13, 1
        %s189 = smul.addr %s188, 8
        %s190 = scalar_lea.vmem %s0, %s189
      $region28: #{tpu_custom_call.1} parent=23 // pred_fallthru
        _
      // Predicated region
      $region29: #{tpu_custom_call.1} parent=23 // pred_check
        %p191 = pneg %p59
      $region30: #{tpu_custom_call.1} parent=23 // pred_check_branch
        %193 = sbr.rel (%p191) target = $region32
      $region31: #{tpu_custom_call.1} parent=23 // pred_region
        %p194 = scmp.lt.s32.totalorder %s13, 1
        %s195 = scalar_select %p194, %s13, 1
        %s196 = smul.addr %s195, 8
        %s197 = scalar_lea.vmem %s1, %s196
      $region32: #{tpu_custom_call.1} parent=23 // pred_fallthru
        _
    $region24: #{tpu_custom_call.1} parent=5 // pred_fallthru
      _
    %p198 = scmp.le.s32.totalorder 1, %s13
    %p199 = scmp.lt.s32.totalorder %s13, 3
    %p200 = pnand %p198, %p199
    %p201 = pneg %p200
    // Predicated region
    $region33: #{tpu_custom_call.1} parent=5 // pred_check
      _
    $region34: #{tpu_custom_call.1} parent=5 // pred_check_branch
      %203 = sbr.rel (%p200) target = $region36
    $region35: #{tpu_custom_call.1} parent=5 // pred_region
      %s204 = ssub.s32 %s13, 1
      %p205 = scmp.lt.s32.totalorder %s18, 1
      %s206 = scalar_select %p205, %s18, 1
      %s207 = smul.addr %s206, 8
      %s208 = scalar_lea.vmem %s0, %s207
      %p209 = pneg %p39
      %p210 = pneg %p36
      %p211 = scmp.lt.s32.totalorder %s18, 1
      %s212 = scalar_select %p211, %s18, 1
      %s213 = smul.addr %s212, 8
      %s214 = scalar_lea.vmem %s1, %s213
      %p215 = pneg %p65
      %p216 = pneg %p62
      %p217 = pneg %p86
      %p218 = pneg %p83
      %p219 = pneg %p107
      %p220 = pneg %p104
      %p221 = pneg %p133
      %p222 = pneg %p130
      %p223 = scmp.lt.s32.totalorder %s18, 1
      %s224 = scalar_select %p223, %s18, 1
      %s225 = smul.addr %s224, 8
      %s226 = scalar_lea.vmem %s4, %s225
      %p227 = pneg %p159
      %p228 = pneg %p156
      %p229 = scmp.lt.s32.totalorder %s18, 1
      %s230 = scalar_select %p229, %s18, 1
      %s231 = smul.addr %s230, 8
      %s232 = scalar_lea.vmem %s5, %s231
      %p233 = scmp.lt.s32.totalorder %s18, 1
      %s234 = scalar_select %p233, %s18, 1
      %s235 = smul.addr %s234, 8
      %s236 = scalar_lea.vmem %s0, %s235
      %p237 = scmp.lt.s32.totalorder %s18, 1
      %s238 = scalar_select %p237, %s18, 1
      %s239 = smul.addr %s238, 8
      %s240 = scalar_lea.vmem %s1, %s239
      %p241 = scmp.lt.s32.totalorder %s18, 1
      %s242 = scalar_select %p241, %s18, 1
      %s243 = smul.addr %s242, 8
      %s244 = scalar_lea.vmem %s4, %s243
      %p245 = scmp.lt.s32.totalorder %s18, 1
      %s246 = scalar_select %p245, %s18, 1
      %s247 = smul.addr %s246, 8
      %s248 = scalar_lea.vmem %s5, %s247
      %v249 = vld [vmem:[%s236] sm:$0xff]
      %v250 = vld [vmem:[%s240] sm:$0xff]
      %v251 = vld [vmem:[%s2] sm:$0x1]
      %v252 = vld [vmem:[%s2 + $0x1] sm:$0x1]
      %v253 = vlaneseq
      %v254 = vshrl.u32 %v253, 7
      %v255 = vsub.s32 0, %v254
      %v256 = vrot.slane %v251, %v255
      %v257 = vmul.f32 %v249, %v256
      %v258 = vlaneseq
      %v259 = vshrl.u32 %v258, 7
      %v260 = vsub.s32 0, %v259
      %v261 = vrot.slane %v252, %v260
      %v262 = vmul.f32 %v250, %v261
      %v263 = vadd.f32 %v257, %v262
      %vm264 = vcmask 261120
      %v265 = vsel %vm264, %v263, 0.0
      %266 = vadd.xlane.f32.xlu0 %v265
      %v267 = vpop.xlane.xlu0 %266
      %s268 = sld [smem:[#allocation2]]
      %v269 = vstv %s268
      %v270 = vadd.f32 %v267, %v269
      %v271 = vsub.f32 0.0, %v270
      %v272 = vmul.f32 %v271, 1.442695
      %v273 = vpow.pop %v272
      %v274 = vadd.f32 %v273, 1.0
      %v275 = vrcp.pop %v274
      %v276 = vmul.f32 1.0, %v275
      %v277 = vmul.f32 %v276, %v250
      %v278 = vadd.f32 %v249, %v277
      %279 = vst.msk [vmem:[%s244] sm:$0xff] %vm264, %v278
      %vm280 = vcmask 7168
      %281 = vst.msk [vmem:[%s248] sm:$0xff] %vm280, %v276
      %p282 = scmp.lt.s32.totalorder %s18, 1
      %s283 = scalar_select %p282, %s18, 1
      %s284 = smul.addr %s283, 8
      %s285 = scalar_lea.vmem %s4, %s284
      %p286 = scmp.lt.s32.totalorder %s18, 1
      %s287 = scalar_select %p286, %s18, 1
      %s288 = smul.addr %s287, 8
      %s289 = scalar_lea.vmem %s5, %s288
      // Predicated region
      $region37: #{tpu_custom_call.1} parent=35 // pred_check
        %p290 = pneg %p130
      $region38: #{tpu_custom_call.1} parent=35 // pred_check_branch
        %292 = sbr.rel (%p290) target = $region40
      $region39: #{tpu_custom_call.1} parent=35 // pred_region
        _
      $region40: #{tpu_custom_call.1} parent=35 // pred_fallthru
        _
      // Predicated region
      $region41: #{tpu_custom_call.1} parent=35 // pred_check
        %p293 = pneg %p156
      $region42: #{tpu_custom_call.1} parent=35 // pred_check_branch
        %295 = sbr.rel (%p293) target = $region44
      $region43: #{tpu_custom_call.1} parent=35 // pred_region
        _
      $region44: #{tpu_custom_call.1} parent=35 // pred_fallthru
        _
    $region36: #{tpu_custom_call.1} parent=5 // pred_fallthru
      _
    %p296 = scmp.le.s32.totalorder 2, %s13
    // Predicated region
    $region45: #{tpu_custom_call.1} parent=5 // pred_check
      %p297 = pneg %p296
    $region46: #{tpu_custom_call.1} parent=5 // pred_check_branch
      %299 = sbr.rel (%p297) target = $region48
    $region47: #{tpu_custom_call.1} parent=5 // pred_region
      %s300 = ssub.s32 %s13, 2
      // Predicated region
      $region49: #{tpu_custom_call.1} parent=47 // pred_check
        %p301 = pneg %p136
      $region50: #{tpu_custom_call.1} parent=47 // pred_check_branch
        %303 = sbr.rel (%p301) target = $region52
      $region51: #{tpu_custom_call.1} parent=47 // pred_region
        %p304 = scmp.lt.s32.totalorder %s19, 1
        %s305 = scalar_select %p304, %s19, 1
        %s306 = smul.addr %s305, 8
        %s307 = scalar_lea.vmem %s4, %s306
      $region52: #{tpu_custom_call.1} parent=47 // pred_fallthru
        _
      // Predicated region
      $region53: #{tpu_custom_call.1} parent=47 // pred_check
        %p308 = pneg %p162
      $region54: #{tpu_custom_call.1} parent=47 // pred_check_branch
        %310 = sbr.rel (%p308) target = $region56
      $region55: #{tpu_custom_call.1} parent=47 // pred_region
        %p311 = scmp.lt.s32.totalorder %s19, 1
        %s312 = scalar_select %p311, %s19, 1
        %s313 = smul.addr %s312, 8
        %s314 = scalar_lea.vmem %s5, %s313
      $region56: #{tpu_custom_call.1} parent=47 // pred_fallthru
        _
    $region48: #{tpu_custom_call.1} parent=5 // pred_fallthru
      _
  $region6: #{tpu_custom_call.1} parent=0 // loop_footer
    %s17 = sadd.s32 1, %s13
  $region7: #{tpu_custom_call.1} parent=0 // loop_footer_branch
    %12 = sbr.rel target = $region3
  $region8: #{tpu_custom_call.1} parent=0 // loop_exit
    _

</llo_original>
